<compile_context>
chip_gen: v7x
topology: tpu7x:2x2x1
jax: 0.10.0
libtpu: 0.0.40
codegen_flags: <defaults>
</compile_context>

<pallas_src>
import functools

import jax
import jax.numpy as jnp
from jax.experimental import pallas as pl
from jax.experimental.pallas import tpu as pltpu


def _round_up(x, m):
    return ((x + m - 1) // m) * m


def _erf_f32(z):
    """Abramowitz & Stegun 7.1.26 erf approximation, |abs err| <= 1.5e-7."""
    a1 = 0.254829592
    a2 = -0.284496736
    a3 = 1.421413741
    a4 = -1.453152027
    a5 = 1.061405429
    p = 0.3275911
    za = jnp.abs(z)
    t = 1.0 / (1.0 + p * za)
    poly = t * (a1 + t * (a2 + t * (a3 + t * (a4 + t * a5))))
    y = 1.0 - poly * jnp.exp(-za * za)
    return jnp.where(z >= 0.0, y, -y)


def _gelu_exact_f32(x):
    """Exact (erf-based) GELU, matching PyTorch nn.GELU() default."""
    return 0.5 * x * (1.0 + _erf_f32(x * 0.7071067811865476))


def _mlp_kernel(x_ref, w1_ref, b1_ref, w2_ref, b2_ref, o_ref):
    """One grid step == one row-tile of the flattened token axis.

    x_ref  : (tm, C_in)       VMEM  (bf16 compute dtype)
    w1_ref : (C_in, hidden)   VMEM  (pre-transposed: x @ W1)
    b1_ref : (1, hidden)      VMEM  (f32)
    w2_ref : (hidden, C_out)  VMEM  (pre-transposed)
    b2_ref : (1, C_out)       VMEM  (f32)
    o_ref  : (tm, C_out)      VMEM  (output dtype == input dtype)
    """
    x = x_ref[...]
    # fc1: bf16 x bf16 -> f32 accumulate on the MXU.
    h = jnp.dot(x, w1_ref[...], preferred_element_type=jnp.float32)
    h = h + b1_ref[...]                      # f32 bias add (broadcast over rows)
    h = _gelu_exact_f32(h)                   # exact-erf GELU in f32
    # fc2: cast activation back to the MXU compute dtype, accumulate f32.
    h = h.astype(w2_ref.dtype)
    y = jnp.dot(h, w2_ref[...], preferred_element_type=jnp.float32)
    y = y + b2_ref[...]
    # Dropout(p=0.0) is identity in the default/eval configuration.
    o_ref[...] = y.astype(o_ref.dtype)


def mlp_forward(x, w1, b1, w2, b2, *, block_rows=256,
                compute_dtype=jnp.bfloat16):
    """Fused MLP forward.

    x  : (..., in_features)                      (any number of leading dims)
    w1 : (hidden_features, in_features)          (PyTorch nn.Linear layout)
    b1 : (hidden_features,)
    w2 : (out_features, hidden_features)
    b2 : (out_features,)
    """
    orig_shape = x.shape
    c_in = orig_shape[-1]
    hidden = w1.shape[0]
    c_out = w2.shape[0]

    # Flatten all leading dims into a single row axis.
    x2 = jnp.asarray(x).reshape(-1, c_in)
    m = x2.shape[0]

    # Row tile: multiple of 8 (sublane), capped by block_rows, covers all rows.
    tm = min(_round_up(block_rows, 8), _round_up(m, 8))
    m_pad = _round_up(m, tm)

    # Cast matmul operands to the MXU compute dtype in the wrapper (shrinks
    # HBM->VMEM DMAs too); biases stay f32 for the f32 epilogue.
    x2c = x2.astype(compute_dtype)
    if m_pad != m:
        x2c = jnp.pad(x2c, ((0, m_pad - m), (0, 0)))
    w1_t = jnp.asarray(w1).T.astype(compute_dtype)          # (C_in, hidden)
    w2_t = jnp.asarray(w2).T.astype(compute_dtype)          # (hidden, C_out)
    b1_2 = jnp.asarray(b1).reshape(1, hidden).astype(jnp.float32)
    b2_2 = jnp.asarray(b2).reshape(1, c_out).astype(jnp.float32)

    out = pl.pallas_call(
        _mlp_kernel,
        out_shape=jax.ShapeDtypeStruct((m_pad, c_out), x.dtype),
        grid_spec=pltpu.PrefetchScalarGridSpec(
            num_scalar_prefetch=0,
            grid=(m_pad // tm,),
            in_specs=[
                pl.BlockSpec((tm, c_in), lambda i: (i, 0)),        # x rows
                pl.BlockSpec((c_in, hidden), lambda i: (0, 0)),    # W1^T (resident)
                pl.BlockSpec((1, hidden), lambda i: (0, 0)),       # b1
                pl.BlockSpec((hidden, c_out), lambda i: (0, 0)),   # W2^T (resident)
                pl.BlockSpec((1, c_out), lambda i: (0, 0)),        # b2
            ],
            out_specs=pl.BlockSpec((tm, c_out), lambda i: (i, 0)),
        ),
        compiler_params=pltpu.CompilerParams(
            dimension_semantics=("parallel",)),   # rows shard across TCs (v7x)
    )(x2c, w1_t, b1_2, w2_t, b2_2)

    out = out[:m]
    return out.reshape(*orig_shape[:-1], c_out)


# ---------------------------------------------------------------------------
# Pure-JAX references
# ---------------------------------------------------------------------------

def mlp_reference_f32(x, w1, b1, w2, b2):
    """Exact PyTorch semantics: f32 matmuls, exact-erf GELU, dropout=0."""
    h = x @ w1.T + b1
    h = jax.nn.gelu(h, approximate=False)
    return h @ w2.T + b2


def mlp_reference_mixed(x, w1, b1, w2, b2, compute_dtype=jnp.bfloat16):
    """Mirrors the kernel's mixed-precision policy (bf16 MXU, f32 accumulate)."""
    xc = x.astype(compute_dtype)
    w1c = w1.T.astype(compute_dtype)
    w2c = w2.T.astype(compute_dtype)
    h = jnp.dot(xc, w1c, preferred_element_type=jnp.float32) + b1
    h = jax.nn.gelu(h, approximate=False)
    h = h.astype(compute_dtype)
    return jnp.dot(h, w2c, preferred_element_type=jnp.float32) + b2


if __name__ == "__main__":
    # Small shapes consistent with the module: tokens [B, N, C], hidden = 4*C.
    B, N, in_features, hidden_features = 2, 8, 32, 128
    out_features = in_features

    key = jax.random.PRNGKey(0)
    kx, kw1, kb1, kw2, kb2 = jax.random.split(key, 5)

    x = jax.random.normal(kx, (B, N, in_features), jnp.float32)
    # nn.Linear(in, hidden): weight (hidden, in), bias (hidden,)
    w1 = jax.random.normal(kw1, (hidden_features, in_features), jnp.float32) * 0.05
    b1 = jax.random.normal(kb1, (hidden_features,), jnp.float32) * 0.05
    # nn.Linear(hidden, out): weight (out, hidden), bias (out,)
    w2 = jax.random.normal(kw2, (out_features, hidden_features), jnp.float32) * 0.05
    b2 = jax.random.normal(kb2, (out_features,), jnp.float32) * 0.05

    # block_rows=8 -> grid=(2,): exercises the tiled row path and gives the
    # parallel axis extent >= 2 for v7x megacore even at this toy size.
    out = mlp_forward(x, w1, b1, w2, b2, block_rows=8)
    out = jax.block_until_ready(out)
    assert out.shape == (B, N, out_features)

    # Tight check vs a reference with the same mixed-precision policy.
    ref_mixed = mlp_reference_mixed(x, w1, b1, w2, b2)
    assert jnp.allclose(out, ref_mixed, atol=2e-3, rtol=2e-3), \
        "mismatch vs mixed-precision reference"

    # Looser check vs the exact f32 PyTorch-semantics reference (bf16 inputs
    # introduce ~0.4% relative rounding).
    ref_f32 = mlp_reference_f32(x, w1, b1, w2, b2)
    assert jnp.allclose(out, ref_f32, atol=1e-2, rtol=1e-2), \
        "mismatch vs f32 reference"

    print("KERNEL_OK")
</pallas_src>

<mosaic_0001>
module attributes {stable_mosaic.version = 11 : i64} {
  func.func @_mlp_kernel(%arg0: i32, %arg1: memref<8x32xbf16, #tpu.memory_space<vmem>>, %arg2: memref<32x128xbf16, #tpu.memory_space<vmem>>, %arg3: memref<1x128xf32, #tpu.memory_space<vmem>>, %arg4: memref<128x32xbf16, #tpu.memory_space<vmem>>, %arg5: memref<1x32xf32, #tpu.memory_space<vmem>>, %arg6: memref<8x32xf32, #tpu.memory_space<vmem>>) attributes {dimension_semantics = [#tpu.dimension_semantics<parallel>], iteration_bounds = array<i64: 2>, scalar_prefetch = 0 : i64, scratch_operands = 0 : i64, tpu.core_type = #tpu.core_type<tc>, window_params = [{transform_indices = @transform_0, window_bounds = array<i64: 8, 32>}, {pipeline_mode = #tpu.pipeline_mode<synchronous>, transform_indices = @transform_1, window_bounds = array<i64: 32, 128>}, {pipeline_mode = #tpu.pipeline_mode<synchronous>, transform_indices = @transform_2, window_bounds = array<i64: 1, 128>}, {pipeline_mode = #tpu.pipeline_mode<synchronous>, transform_indices = @transform_3, window_bounds = array<i64: 128, 32>}, {pipeline_mode = #tpu.pipeline_mode<synchronous>, transform_indices = @transform_4, window_bounds = array<i64: 1, 32>}, {transform_indices = @transform_5, window_bounds = array<i64: 8, 32>}]} {
    %c0 = arith.constant 0 : index
    %c0_0 = arith.constant 0 : index
    %0 = vector.load %arg1[%c0, %c0_0] : memref<8x32xbf16, #tpu.memory_space<vmem>>, vector<8x32xbf16>
    %c0_1 = arith.constant 0 : index
    %c0_2 = arith.constant 0 : index
    %1 = vector.load %arg2[%c0_1, %c0_2] : memref<32x128xbf16, #tpu.memory_space<vmem>>, vector<32x128xbf16>
    %cst = arith.constant dense<0.000000e+00> : vector<8x128xf32>
    %2 = tpu.matmul %0, %1, %cst {dimension_numbers = #tpu.dot_dimension_numbers<[1], [0], [0], [1], [0, 0, 1, 1], [], []>} : vector<8x32xbf16>, vector<32x128xbf16>, vector<8x128xf32> -> vector<8x128xf32>
    %c0_3 = arith.constant 0 : index
    %c0_4 = arith.constant 0 : index
    %3 = vector.load %arg3[%c0_3, %c0_4] : memref<1x128xf32, #tpu.memory_space<vmem>>, vector<1x128xf32>
    %4 = vector.broadcast %3 : vector<1x128xf32> to vector<8x128xf32>
    %5 = arith.addf %2, %4 : vector<8x128xf32>
    %cst_5 = arith.constant 5.000000e-01 : f32
    %6 = vector.broadcast %cst_5 : f32 to vector<8x128xf32>
    %7 = arith.mulf %6, %5 : vector<8x128xf32>
    %cst_6 = arith.constant 0.707106769 : f32
    %8 = vector.broadcast %cst_6 : f32 to vector<8x128xf32>
    %9 = arith.mulf %5, %8 : vector<8x128xf32>
    %10 = math.absf %9 : vector<8x128xf32>
    %cst_7 = arith.constant 0.327591091 : f32
    %11 = vector.broadcast %cst_7 : f32 to vector<8x128xf32>
    %12 = arith.mulf %11, %10 : vector<8x128xf32>
    %cst_8 = arith.constant 1.000000e+00 : f32
    %13 = vector.broadcast %cst_8 : f32 to vector<8x128xf32>
    %14 = arith.addf %13, %12 : vector<8x128xf32>
    %cst_9 = arith.constant 1.000000e+00 : f32
    %15 = vector.broadcast %cst_9 : f32 to vector<8x128xf32>
    %16 = arith.divf %15, %14 : vector<8x128xf32>
    %cst_10 = arith.constant 1.06140542 : f32
    %17 = vector.broadcast %cst_10 : f32 to vector<8x128xf32>
    %18 = arith.mulf %16, %17 : vector<8x128xf32>
    %cst_11 = arith.constant -1.45315206 : f32
    %19 = vector.broadcast %cst_11 : f32 to vector<8x128xf32>
    %20 = arith.addf %19, %18 : vector<8x128xf32>
    %21 = arith.mulf %16, %20 : vector<8x128xf32>
    %cst_12 = arith.constant 1.42141378 : f32
    %22 = vector.broadcast %cst_12 : f32 to vector<8x128xf32>
    %23 = arith.addf %22, %21 : vector<8x128xf32>
    %24 = arith.mulf %16, %23 : vector<8x128xf32>
    %cst_13 = arith.constant -0.284496725 : f32
    %25 = vector.broadcast %cst_13 : f32 to vector<8x128xf32>
    %26 = arith.addf %25, %24 : vector<8x128xf32>
    %27 = arith.mulf %16, %26 : vector<8x128xf32>
    %cst_14 = arith.constant 0.254829586 : f32
    %28 = vector.broadcast %cst_14 : f32 to vector<8x128xf32>
    %29 = arith.addf %28, %27 : vector<8x128xf32>
    %30 = arith.mulf %16, %29 : vector<8x128xf32>
    %cst_15 = arith.constant 0.000000e+00 : f32
    %31 = vector.broadcast %cst_15 : f32 to vector<8x128xf32>
    %32 = arith.subf %31, %10 : vector<8x128xf32>
    %33 = arith.mulf %32, %10 : vector<8x128xf32>
    %34 = math.exp %33 : vector<8x128xf32>
    %35 = arith.mulf %30, %34 : vector<8x128xf32>
    %cst_16 = arith.constant 1.000000e+00 : f32
    %36 = vector.broadcast %cst_16 : f32 to vector<8x128xf32>
    %37 = arith.subf %36, %35 : vector<8x128xf32>
    %cst_17 = arith.constant 0.000000e+00 : f32
    %38 = vector.broadcast %cst_17 : f32 to vector<8x128xf32>
    %39 = arith.cmpf oge, %9, %38 : vector<8x128xf32>
    %cst_18 = arith.constant 0.000000e+00 : f32
    %40 = vector.broadcast %cst_18 : f32 to vector<8x128xf32>
    %41 = arith.subf %40, %37 : vector<8x128xf32>
    %42 = arith.select %39, %37, %41 : vector<8x128xi1>, vector<8x128xf32>
    %cst_19 = arith.constant 1.000000e+00 : f32
    %43 = vector.broadcast %cst_19 : f32 to vector<8x128xf32>
    %44 = arith.addf %43, %42 : vector<8x128xf32>
    %45 = arith.mulf %7, %44 : vector<8x128xf32>
    %46 = arith.truncf %45 : vector<8x128xf32> to vector<8x128xbf16>
    %c0_20 = arith.constant 0 : index
    %c0_21 = arith.constant 0 : index
    %47 = vector.load %arg4[%c0_20, %c0_21] : memref<128x32xbf16, #tpu.memory_space<vmem>>, vector<128x32xbf16>
    %cst_22 = arith.constant dense<0.000000e+00> : vector<8x32xf32>
    %48 = tpu.matmul %46, %47, %cst_22 {dimension_numbers = #tpu.dot_dimension_numbers<[1], [0], [0], [1], [0, 0, 1, 1], [], []>} : vector<8x128xbf16>, vector<128x32xbf16>, vector<8x32xf32> -> vector<8x32xf32>
    %c0_23 = arith.constant 0 : index
    %c0_24 = arith.constant 0 : index
    %49 = vector.load %arg5[%c0_23, %c0_24] : memref<1x32xf32, #tpu.memory_space<vmem>>, vector<1x32xf32>
    %50 = vector.broadcast %49 : vector<1x32xf32> to vector<8x32xf32>
    %51 = arith.addf %48, %50 : vector<8x32xf32>
    %c0_25 = arith.constant 0 : index
    %c0_26 = arith.constant 0 : index
    %52 = vector.load %arg6[%c0_25, %c0_26] : memref<8x32xf32, #tpu.memory_space<vmem>>, vector<8x32xf32>
    tpu.vector_store %arg6[%c0_25, %c0_26], %51 {strides = array<i32>} : memref<8x32xf32, #tpu.memory_space<vmem>>, vector<8x32xf32>,
    return
  }
  func.func @transform_0(%arg0: i32) -> (i32, i32) {
    %c0_i32 = arith.constant 0 : i32
    %c0_i32_0 = arith.constant 0 : i32
    return %arg0, %c0_i32 : i32, i32
  }
  func.func @transform_1(%arg0: i32) -> (i32, i32) {
    %c0_i32 = arith.constant 0 : i32
    %c0_i32_0 = arith.constant 0 : i32
    %c0_i32_1 = arith.constant 0 : i32
    return %c0_i32, %c0_i32_0 : i32, i32
  }
  func.func @transform_2(%arg0: i32) -> (i32, i32) {
    %c0_i32 = arith.constant 0 : i32
    %c0_i32_0 = arith.constant 0 : i32
    %c0_i32_1 = arith.constant 0 : i32
    return %c0_i32, %c0_i32_0 : i32, i32
  }
  func.func @transform_3(%arg0: i32) -> (i32, i32) {
    %c0_i32 = arith.constant 0 : i32
    %c0_i32_0 = arith.constant 0 : i32
    %c0_i32_1 = arith.constant 0 : i32
    return %c0_i32, %c0_i32_0 : i32, i32
  }
  func.func @transform_4(%arg0: i32) -> (i32, i32) {
    %c0_i32 = arith.constant 0 : i32
    %c0_i32_0 = arith.constant 0 : i32
    %c0_i32_1 = arith.constant 0 : i32
    return %c0_i32, %c0_i32_0 : i32, i32
  }
  func.func @transform_5(%arg0: i32) -> (i32, i32) {
    %c0_i32 = arith.constant 0 : i32
    %c0_i32_0 = arith.constant 0 : i32
    return %arg0, %c0_i32 : i32, i32
  }
}

</mosaic_0001>

<llo_original>
// kernel: tpu_custom_call.1
$region0: #{tpu_custom_call.1}
  #allocation0 [shape = 'u32[]', space=smem, size = 0x4, offset = 0x4, fixed_abs, tag = 'smem constant byte address 0x4 - core index']
  #allocation1 [shape = 'u32[144,128]{1,0:T(1,128)}', space=vmem, size = 0x12000, scoped, tag = 'internal scratch']
  %s0 = inlined_call_operand.vmem [shape: bf16[16,32], index: 0, kind: input, shape index: {}]
  %s1 = inlined_call_operand.vmem [shape: bf16[32,128], index: 1, kind: input, shape index: {}]
  %s2 = inlined_call_operand.vmem [shape: f32[1,128], index: 2, kind: input, shape index: {}]
  %s3 = inlined_call_operand.vmem [shape: bf16[128,32], index: 3, kind: input, shape index: {}]
  %s4 = inlined_call_operand.vmem [shape: f32[1,32], index: 4, kind: input, shape index: {}]
  %s5 = inlined_call_operand.hbm [shape: f32[16,32], index: 5, kind: output, shape index: {}]
  %s6 = sld [smem:[#allocation0]]
  $region53: #{tpu_custom_call.1} parent=0
    _
  %s8 = ssub.s32 1, %s6
  %s9 = scalar_select 0, %s8, %s6
  $region1: #{tpu_custom_call.1} parent=0
    #allocation2 [shape = 'u8[8192]{0}', space=vmem, size = 0x2000, scoped, tag = 'output window, operand 0']
    #allocation3 [shape = 's32[2]{0}', space=sflag, size = 0x8, scoped, tag = 'scoped memory for tpu_custom_call.1']
    %10 = vsyncpa [#allocation3], 0
    %s11 = scalar_lea.sflag [#allocation3], 1
    %12 = vsyncpa %s11, 0
    loop: start=0, step=1, limit=4
    $region2: #{tpu_custom_call.1} parent=1 // loop_pre_header
      _
    $region3: #{tpu_custom_call.1} parent=1 // loop_header
      %s14 = sphi 0, %s18
      %p15 = scmp.ge.s32.totalorder %s14, 4
      %s24 = sphi 0, %s26
      %s27 = sphi 0, %s24
      %s28 = sphi 0, %s27
      %s44 = sphi 0, %s28
      %s48 = sphi 0, %s48
      %s50 = sphi 0, %s48
      %s51 = sphi 0, %s50
      %s65 = sphi 0, %s51
      %s69 = sphi 0, %s69
      %s71 = sphi 0, %s69
      %s72 = sphi 0, %s71
      %s86 = sphi 0, %s72
      %s90 = sphi 0, %s90
      %s92 = sphi 0, %s90
      %s93 = sphi 0, %s92
      %s107 = sphi 0, %s93
      %s111 = sphi 0, %s111
      %s113 = sphi 0, %s111
      %s114 = sphi 0, %s113
      %s128 = sphi 0, %s114
      %s134 = sphi 0, %s136
      %s137 = sphi 0, %s134
      %s138 = sphi 0, %s137
      %s154 = sphi 0, %s138
    $region4: #{tpu_custom_call.1} parent=1 // loop_header_branch
      %17 = sbr.rel (%p15) target = $region8
    $region5: #{tpu_custom_call.1} parent=1 // loop_body
      %s19 = ssub.s32 %s14, 1
      %s20 = ssub.s32 %s14, 2
      %s21 = sadd.s32 %s14, 1
      %s22 = ssub.s32 %s14, %s21
      %p23 = scmp.eq.s32.totalorder %s22, 0
      %s25 = sadd.s32 %s24, 1
      %s26 = scalar_select %p23, %s24, %s25
      %p29 = pneg %p23
      %p30 = scmp.eq.s32.totalorder %s14, 1
      %p31 = por %p29, %p30
      %p32 = scmp.ne.s32.totalorder %s24, %s27
      %p33 = scmp.eq.s32.totalorder %s14, 0
      %p34 = por %p32, %p33
      %p35 = scmp.ne.s32.totalorder %s24, %s27
      %p36 = scmp.eq.s32.totalorder %s19, 1
      %p37 = por %p35, %p36
      %p38 = scmp.ne.s32.totalorder %s27, %s28
      %p39 = scmp.eq.s32.totalorder %s19, 0
      %p40 = por %p38, %p39
      %p41 = scmp.ne.s32.totalorder %s27, %s28
      %p42 = scmp.eq.s32.totalorder %s20, 1
      %p43 = por %p41, %p42
      %p45 = scmp.ne.s32.totalorder %s28, %s44
      %p46 = scmp.eq.s32.totalorder %s20, 0
      %p47 = por %p45, %p46
      %s49 = sadd.s32 %s48, 1
      %p52 = scmp.eq.s32.totalorder %s14, 1
      %p53 = scmp.ne.s32.totalorder %s48, %s50
      %p54 = scmp.eq.s32.totalorder %s14, 0
      %p55 = por %p53, %p54
      %p56 = scmp.ne.s32.totalorder %s48, %s50
      %p57 = scmp.eq.s32.totalorder %s19, 1
      %p58 = por %p56, %p57
      %p59 = scmp.ne.s32.totalorder %s50, %s51
      %p60 = scmp.eq.s32.totalorder %s19, 0
      %p61 = por %p59, %p60
      %p62 = scmp.ne.s32.totalorder %s50, %s51
      %p63 = scmp.eq.s32.totalorder %s20, 1
      %p64 = por %p62, %p63
      %p66 = scmp.ne.s32.totalorder %s51, %s65
      %p67 = scmp.eq.s32.totalorder %s20, 0
      %p68 = por %p66, %p67
      %s70 = sadd.s32 %s69, 1
      %p73 = scmp.eq.s32.totalorder %s14, 1
      %p74 = scmp.ne.s32.totalorder %s69, %s71
      %p75 = scmp.eq.s32.totalorder %s14, 0
      %p76 = por %p74, %p75
      %p77 = scmp.ne.s32.totalorder %s69, %s71
      %p78 = scmp.eq.s32.totalorder %s19, 1
      %p79 = por %p77, %p78
      %p80 = scmp.ne.s32.totalorder %s71, %s72
      %p81 = scmp.eq.s32.totalorder %s19, 0
      %p82 = por %p80, %p81
      %p83 = scmp.ne.s32.totalorder %s71, %s72
      %p84 = scmp.eq.s32.totalorder %s20, 1
      %p85 = por %p83, %p84
      %p87 = scmp.ne.s32.totalorder %s72, %s86
      %p88 = scmp.eq.s32.totalorder %s20, 0
      %p89 = por %p87, %p88
      %s91 = sadd.s32 %s90, 1
      %p94 = scmp.eq.s32.totalorder %s14, 1
      %p95 = scmp.ne.s32.totalorder %s90, %s92
      %p96 = scmp.eq.s32.totalorder %s14, 0
      %p97 = por %p95, %p96
      %p98 = scmp.ne.s32.totalorder %s90, %s92
      %p99 = scmp.eq.s32.totalorder %s19, 1
      %p100 = por %p98, %p99
      %p101 = scmp.ne.s32.totalorder %s92, %s93
      %p102 = scmp.eq.s32.totalorder %s19, 0
      %p103 = por %p101, %p102
      %p104 = scmp.ne.s32.totalorder %s92, %s93
      %p105 = scmp.eq.s32.totalorder %s20, 1
      %p106 = por %p104, %p105
      %p108 = scmp.ne.s32.totalorder %s93, %s107
      %p109 = scmp.eq.s32.totalorder %s20, 0
      %p110 = por %p108, %p109
      %s112 = sadd.s32 %s111, 1
      %p115 = scmp.eq.s32.totalorder %s14, 1
      %p116 = scmp.ne.s32.totalorder %s111, %s113
      %p117 = scmp.eq.s32.totalorder %s14, 0
      %p118 = por %p116, %p117
      %p119 = scmp.ne.s32.totalorder %s111, %s113
      %p120 = scmp.eq.s32.totalorder %s19, 1
      %p121 = por %p119, %p120
      %p122 = scmp.ne.s32.totalorder %s113, %s114
      %p123 = scmp.eq.s32.totalorder %s19, 0
      %p124 = por %p122, %p123
      %p125 = scmp.ne.s32.totalorder %s113, %s114
      %p126 = scmp.eq.s32.totalorder %s20, 1
      %p127 = por %p125, %p126
      %p129 = scmp.ne.s32.totalorder %s114, %s128
      %p130 = scmp.eq.s32.totalorder %s20, 0
      %p131 = por %p129, %p130
      %s132 = ssub.s32 %s14, %s21
      %p133 = scmp.eq.s32.totalorder %s132, 0
      %s135 = sadd.s32 %s134, 1
      %s136 = scalar_select %p133, %s134, %s135
      %p139 = pneg %p133
      %p140 = scmp.eq.s32.totalorder %s14, 1
      %p141 = por %p139, %p140
      %p142 = scmp.ne.s32.totalorder %s134, %s137
      %p143 = scmp.eq.s32.totalorder %s14, 0
      %p144 = por %p142, %p143
      %p145 = scmp.ne.s32.totalorder %s134, %s137
      %p146 = scmp.eq.s32.totalorder %s19, 1
      %p147 = por %p145, %p146
      %p148 = scmp.ne.s32.totalorder %s137, %s138
      %p149 = scmp.eq.s32.totalorder %s19, 0
      %p150 = por %p148, %p149
      %p151 = scmp.ne.s32.totalorder %s137, %s138
      %p152 = scmp.eq.s32.totalorder %s20, 1
      %p153 = por %p151, %p152
      %p155 = scmp.ne.s32.totalorder %s138, %s154
      %p156 = scmp.eq.s32.totalorder %s20, 0
      %p157 = por %p155, %p156
      %p158 = scmp.le.s32.totalorder 1, %s14
      %p159 = scmp.lt.s32.totalorder %s14, 3
      %p160 = pnand %p158, %p159
      %p161 = pneg %p160
      // Predicated region
      $region9: #{tpu_custom_call.1} parent=5 // pred_check
        _
      $region10: #{tpu_custom_call.1} parent=5 // pred_check_branch
        %163 = sbr.rel (%p160) target = $region12
      $region11: #{tpu_custom_call.1} parent=5 // pred_region
        %s164 = ssub.s32 %s14, 1
        // Predicated region
        $region13: #{tpu_custom_call.1} parent=11 // pred_check
          %p165 = pneg %p61
        $region14: #{tpu_custom_call.1} parent=11 // pred_check_branch
          %167 = sbr.rel (%p165) target = $region16
        $region15: #{tpu_custom_call.1} parent=11 // pred_region
          _
        $region16: #{tpu_custom_call.1} parent=11 // pred_fallthru
          _
        // Predicated region
        $region17: #{tpu_custom_call.1} parent=11 // pred_check
          %p168 = pneg %p82
        $region18: #{tpu_custom_call.1} parent=11 // pred_check_branch
          %170 = sbr.rel (%p168) target = $region20
        $region19: #{tpu_custom_call.1} parent=11 // pred_region
          _
        $region20: #{tpu_custom_call.1} parent=11 // pred_fallthru
          _
        // Predicated region
        $region21: #{tpu_custom_call.1} parent=11 // pred_check
          %p171 = pneg %p103
        $region22: #{tpu_custom_call.1} parent=11 // pred_check_branch
          %173 = sbr.rel (%p171) target = $region24
        $region23: #{tpu_custom_call.1} parent=11 // pred_region
          _
        $region24: #{tpu_custom_call.1} parent=11 // pred_fallthru
          _
        // Predicated region
        $region25: #{tpu_custom_call.1} parent=11 // pred_check
          %p174 = pneg %p124
        $region26: #{tpu_custom_call.1} parent=11 // pred_check_branch
          %176 = sbr.rel (%p174) target = $region28
        $region27: #{tpu_custom_call.1} parent=11 // pred_region
          _
        $region28: #{tpu_custom_call.1} parent=11 // pred_fallthru
          _
      $region12: #{tpu_custom_call.1} parent=5 // pred_fallthru
        _
      %p177 = scmp.lt.s32.totalorder %s14, 2
      // Predicated region
      $region29: #{tpu_custom_call.1} parent=5 // pred_check
        %p178 = pneg %p177
      $region30: #{tpu_custom_call.1} parent=5 // pred_check_branch
        %180 = sbr.rel (%p178) target = $region32
      $region31: #{tpu_custom_call.1} parent=5 // pred_region
        // Predicated region
        $region33: #{tpu_custom_call.1} parent=31 // pred_check
          %p181 = pneg %p34
        $region34: #{tpu_custom_call.1} parent=31 // pred_check_branch
          %183 = sbr.rel (%p181) target = $region36
        $region35: #{tpu_custom_call.1} parent=31 // pred_region
          %p184 = scmp.lt.s32.totalorder %s14, 1
          %s185 = scalar_select %p184, %s14, 1
          %s186 = smul.addr %s185, 4
          %s187 = scalar_lea.vmem %s0, %s186
        $region36: #{tpu_custom_call.1} parent=31 // pred_fallthru
          _
      $region32: #{tpu_custom_call.1} parent=5 // pred_fallthru
        _
      %p188 = scmp.le.s32.totalorder 1, %s14
      %p189 = scmp.lt.s32.totalorder %s14, 3
      %p190 = pnand %p188, %p189
      %p191 = pneg %p190
      // Predicated region
      $region37: #{tpu_custom_call.1} parent=5 // pred_check
        _
      $region38: #{tpu_custom_call.1} parent=5 // pred_check_branch
        %193 = sbr.rel (%p190) target = $region40
      $region39: #{tpu_custom_call.1} parent=5 // pred_region
        %s194 = ssub.s32 %s14, 1
        %p195 = scmp.lt.s32.totalorder %s19, 1
        %s196 = scalar_select %p195, %s19, 1
        %s197 = smul.addr %s196, 4
        %s198 = scalar_lea.vmem %s0, %s197
        %p199 = pneg %p40
        %p200 = pneg %p37
        %p201 = pneg %p61
        %p202 = pneg %p58
        %p203 = pneg %p82
        %p204 = pneg %p79
        %p205 = pneg %p103
        %p206 = pneg %p100
        %p207 = pneg %p124
        %p208 = pneg %p121
        %p209 = pneg %p150
        %p210 = pneg %p147
        %s211 = sand.u32 %s137, 1
        %s212 = scalar_lea.sflag [#allocation3], %s211
        %s213 = sand.u32 %s137, 1
        %s214 = smul.addr %s213, 8
        %s215 = scalar_lea.vmem [#allocation2], %s214
        %p216 = scmp.lt.s32.totalorder %s19, 1
        %s217 = scalar_select %p216, %s19, 1
        %s218 = smul.addr %s217, 4
        %s219 = scalar_lea.vmem %s0, %s218
        %v221 = vld [vmem:[%s219] sm:$0xf]
        %v222 = vld [vmem:[%s1] sm:$0xf]
        %v223 = vld [vmem:[%s1 + $0x4] sm:$0xf]
        %v224 = vld [vmem:[%s1 + $0x8] sm:$0xf]
        %v225 = vld [vmem:[%s1 + $0xc] sm:$0xf]
        %v226 = vld [vmem:[%s2] sm:$0x1]
        %v228 = vlaneseq
        %v229 = vshrl.u32 %v228, 7
        %v230 = vsub.s32 0, %v229
        %v231 = vrot.slane %v226, %v230
        %v237 = vunpack.c.l.b16 %v222
        %v238 = vunpack.c.l.b16 %v223
        %v239 = vunpack.c.l.b16 %v224
        %v240 = vunpack.c.l.b16 %v225
        %v241 = vpack.c.b16 %v238, %v237
        %v242 = vpack.c.b16 %v240, %v239
        %vm245 = vcmask 261120
        %v247 = vsel %vm245, %v221, 0
        %249 = vmatprep.subr.bf16.mxu0 0
        %250 = vmatpush1.bf16.msra.mxu0 %v241
        %251 = vmatprep.subr.bf16.mxu0 0
        %252 = vmatpush1.bf16.msra.mxu0 %v242
        %253 = vmatprep.subr.bf16.mxu0 0
        %254 = vmatpush1.bf16.msra.mxu0 0
        %255 = vmatprep.subr.bf16.mxu0 0
        %256 = vmatpush1.bf16.msra.mxu0 0
        %257 = vmatprep.subr.bf16.mxu0 0
        %258 = vmatpush1.bf16.msra.mxu0 0
        %259 = vmatprep.subr.bf16.mxu0 0
        %260 = vmatpush1.bf16.msra.mxu0 0
        %261 = vmatprep.subr.bf16.mxu0 0
        %262 = vmatpush1.bf16.msra.mxu0 0
        %263 = vmatprep.subr.bf16.mxu0 0
        %264 = vmatpush1.bf16.msra.mxu0 0
        %265 = vmatprep.subr.bf16.mxu0 0
        %266 = vmatpush1.bf16.msra.mxu0 0
        %267 = vmatprep.subr.bf16.mxu0 0
        %268 = vmatpush1.bf16.msra.mxu0 0
        %269 = vmatprep.subr.bf16.mxu0 0
        %270 = vmatpush1.bf16.msra.mxu0 0
        %271 = vmatprep.subr.bf16.mxu0 0
        %272 = vmatpush1.bf16.msra.mxu0 0
        %273 = vmatprep.subr.bf16.mxu0 0
        %274 = vmatpush1.bf16.msra.mxu0 0
        %275 = vmatprep.subr.bf16.mxu0 0
        %276 = vmatpush1.bf16.msra.mxu0 0
        %277 = vmatprep.subr.bf16.mxu0 0
        %278 = vmatpush1.bf16.msra.mxu0 0
        %279 = vmatprep.subr.bf16.mxu0 0
        %280 = vmatpush1.bf16.msra.mxu0 0
        %281 = vmatprep.mubr.bf16.mxu0 0
        %282 = vmatmul.mubr.bf16.gmra.mrb[0].mxu0 %v247
        %v283 = vpop.f32.mrb[0].mxu0
        %v284 = vadd.f32 %v231, %v283
        %v285 = vpop.f32.mrb[0].mxu0
        %v286 = vpop.f32.mrb[0].mxu0
        %v287 = vpop.f32.mrb[0].mxu0
        %288 = vdwg.mxu0
        %v289 = vmul.f32 %v284, 0.5
        %v290 = vmul.f32 %v284, 0.70710677
        %v291 = vand.u32 2147483647, %v290
        %v292 = vmul.f32 %v291, 0.3275911
        %v293 = vadd.f32 %v292, 1.0
        %v294 = vrcp.pop %v293
        %v295 = vmul.f32 1.0, %v294
        %v296 = vmul.f32 %v295, 1.0614054
        %v297 = vadd.f32 %v296, -1.4531521
        %v298 = vmul.f32 %v295, %v297
        %v299 = vadd.f32 %v298, 1.4214138
        %v300 = vmul.f32 %v295, %v299
        %v301 = vadd.f32 %v300, -0.28449672
        %v302 = vmul.f32 %v295, %v301
        %v303 = vadd.f32 %v302, 0.2548296
        %v304 = vmul.f32 %v295, %v303
        %v305 = vsub.f32 0.0, %v291
        %v306 = vmul.f32 %v305, %v291
        %v307 = vmul.f32 %v306, 1.442695
        %v308 = vpow.pop %v307
        %v309 = vmul.f32 %v304, %v308
        %v310 = vsub.f32 1.0, %v309
        %vm311 = vcmp.ge.f32.partialorder %v290, 0.0
        %v312 = vsub.f32 0.0, %v310
        %v313 = vsel %vm311, %v310, %v312
        %v314 = vadd.f32 %v313, 1.0
        %v315 = vmul.f32 %v289, %v314
        %v316 = vpack.c.bf16 %v315, %v315
        %v317 = vld [vmem:[%s3] sm:$0xf]
        %v318 = vld [vmem:[%s3 + $0x4] sm:$0xf]
        %v319 = vld [vmem:[%s3 + $0x8] sm:$0xf]
        %v320 = vld [vmem:[%s3 + $0xc] sm:$0xf]
        %v321 = vld [vmem:[%s3 + $0x10] sm:$0xf]
        %v322 = vld [vmem:[%s3 + $0x14] sm:$0xf]
        %v323 = vld [vmem:[%s3 + $0x18] sm:$0xf]
        %v324 = vld [vmem:[%s3 + $0x1c] sm:$0xf]
        %v325 = vld [vmem:[%s3 + $0x20] sm:$0xf]
        %v326 = vld [vmem:[%s3 + $0x24] sm:$0xf]
        %v327 = vld [vmem:[%s3 + $0x28] sm:$0xf]
        %v328 = vld [vmem:[%s3 + $0x2c] sm:$0xf]
        %v329 = vld [vmem:[%s3 + $0x30] sm:$0xf]
        %v330 = vld [vmem:[%s3 + $0x34] sm:$0xf]
        %v331 = vld [vmem:[%s3 + $0x38] sm:$0xf]
        %v332 = vld [vmem:[%s3 + $0x3c] sm:$0xf]
        %v333 = vld [vmem:[%s4] sm:$0x1]
        %v335 = vlaneseq
        %v336 = vshrl.u32 %v335, 7
        %v337 = vsub.s32 0, %v336
        %v338 = vrot.slane %v333, %v337
        %v356 = vunpack.c.l.b16 %v317
        %v357 = vunpack.c.l.b16 %v318
        %v358 = vunpack.c.l.b16 %v319
        %v359 = vunpack.c.l.b16 %v320
        %v360 = vunpack.c.l.b16 %v321
        %v361 = vunpack.c.l.b16 %v322
        %v362 = vunpack.c.l.b16 %v323
        %v363 = vunpack.c.l.b16 %v324
        %v364 = vunpack.c.l.b16 %v325
        %v365 = vunpack.c.l.b16 %v326
        %v366 = vunpack.c.l.b16 %v327
        %v367 = vunpack.c.l.b16 %v328
        %v368 = vunpack.c.l.b16 %v329
        %v369 = vunpack.c.l.b16 %v330
        %v370 = vunpack.c.l.b16 %v331
        %v371 = vunpack.c.l.b16 %v332
        %v372 = vpack.c.b16 %v357, %v356
        %v373 = vpack.c.b16 %v359, %v358
        %v374 = vpack.c.b16 %v361, %v360
        %v375 = vpack.c.b16 %v363, %v362
        %v376 = vpack.c.b16 %v365, %v364
        %v377 = vpack.c.b16 %v367, %v366
        %v378 = vpack.c.b16 %v369, %v368
        %v379 = vpack.c.b16 %v371, %v370
        %388 = vmatprep.subr.bf16.mxu0 0
        %389 = vmatpush1.bf16.msra.mxu0 %v372
        %390 = vmatprep.subr.bf16.mxu0 0
        %391 = vmatpush1.bf16.msra.mxu0 %v373
        %392 = vmatprep.subr.bf16.mxu0 0
        %393 = vmatpush1.bf16.msra.mxu0 %v374
        %394 = vmatprep.subr.bf16.mxu0 0
        %395 = vmatpush1.bf16.msra.mxu0 %v375
        %396 = vmatprep.subr.bf16.mxu0 0
        %397 = vmatpush1.bf16.msra.mxu0 %v376
        %398 = vmatprep.subr.bf16.mxu0 0
        %399 = vmatpush1.bf16.msra.mxu0 %v377
        %400 = vmatprep.subr.bf16.mxu0 0
        %401 = vmatpush1.bf16.msra.mxu0 %v378
        %402 = vmatprep.subr.bf16.mxu0 0
        %403 = vmatpush1.bf16.msra.mxu0 %v379
        %404 = vmatprep.subr.bf16.mxu0 0
        %405 = vmatpush1.bf16.msra.mxu0 0
        %406 = vmatprep.subr.bf16.mxu0 0
        %407 = vmatpush1.bf16.msra.mxu0 0
        %408 = vmatprep.subr.bf16.mxu0 0
        %409 = vmatpush1.bf16.msra.mxu0 0
        %410 = vmatprep.subr.bf16.mxu0 0
        %411 = vmatpush1.bf16.msra.mxu0 0
        %412 = vmatprep.subr.bf16.mxu0 0
        %413 = vmatpush1.bf16.msra.mxu0 0
        %414 = vmatprep.subr.bf16.mxu0 0
        %415 = vmatpush1.bf16.msra.mxu0 0
        %416 = vmatprep.subr.bf16.mxu0 0
        %417 = vmatpush1.bf16.msra.mxu0 0
        %418 = vmatprep.subr.bf16.mxu0 0
        %419 = vmatpush1.bf16.msra.mxu0 0
        %420 = vmatprep.mubr.bf16.mxu0 0
        %421 = vmatmul.mubr.bf16.gmra.mrb[0].mxu0 %v316
        %v422 = vpop.f32.mrb[0].mxu0
        %v423 = vadd.f32 %v338, %v422
        %v424 = vpop.f32.mrb[0].mxu0
        %v425 = vpop.f32.mrb[0].mxu0
        %v426 = vpop.f32.mrb[0].mxu0
        %427 = vdwg.mxu0
        %428 = vst.msk [vmem:[%s215] sm:$0xff] %vm245, %v423
        %s429 = sand.u32 %s137, 1
        %s430 = scalar_lea.sflag [#allocation3], %s429
        %s431 = sand.u32 %s137, 1
        %s432 = smul.addr %s431, 8
        %s433 = scalar_lea.vmem [#allocation2], %s432
        // Predicated region
        $region41: #{tpu_custom_call.1} parent=39 // pred_check
          %p434 = pneg %p147
        $region42: #{tpu_custom_call.1} parent=39 // pred_check_branch
          %436 = sbr.rel (%p434) target = $region44
        $region43: #{tpu_custom_call.1} parent=39 // pred_region
          %s438 = ssub.s32 128, 128
          %439 = vsyncadd %s430, %s438
          %s440 = smul.addr %s19, 128
          %s441 = scalar_lea.hbm %s5, %s440
          %s443 = sshll.u32 %s433, 4
          %s444 = int_to_ptr.vmem [resolvable:$true] %s443
          %446 = dma.vmem_to_hbm [thread:$0]  %s444, 128, %s441, %s430
        $region44: #{tpu_custom_call.1} parent=39 // pred_fallthru
          _
      $region40: #{tpu_custom_call.1} parent=5 // pred_fallthru
        _
      %p447 = scmp.le.s32.totalorder 2, %s14
      // Predicated region
      $region45: #{tpu_custom_call.1} parent=5 // pred_check
        %p448 = pneg %p447
      $region46: #{tpu_custom_call.1} parent=5 // pred_check_branch
        %450 = sbr.rel (%p448) target = $region48
      $region47: #{tpu_custom_call.1} parent=5 // pred_region
        %s451 = ssub.s32 %s14, 2
        // Predicated region
        $region49: #{tpu_custom_call.1} parent=47 // pred_check
          %p452 = pneg %p153
        $region50: #{tpu_custom_call.1} parent=47 // pred_check_branch
          %454 = sbr.rel (%p452) target = $region52
        $region51: #{tpu_custom_call.1} parent=47 // pred_region
          %s455 = sand.u32 %s138, 1
          %s456 = scalar_lea.sflag [#allocation3], %s455
          %s457 = sand.u32 %s138, 1
          %s458 = smul.addr %s457, 8
          %s459 = scalar_lea.vmem [#allocation2], %s458
          %460 = dma.done %s456, 128
        $region52: #{tpu_custom_call.1} parent=47 // pred_fallthru
          _
      $region48: #{tpu_custom_call.1} parent=5 // pred_fallthru
        _
    $region6: #{tpu_custom_call.1} parent=1 // loop_footer
      %s18 = sadd.s32 1, %s14
    $region7: #{tpu_custom_call.1} parent=1 // loop_footer_branch
      %13 = sbr.rel target = $region3
    $region8: #{tpu_custom_call.1} parent=1 // loop_exit
      _
    %461 = vsyncpa [#allocation3], 1
    %s462 = scalar_lea.sflag [#allocation3], 1
    %463 = vsyncpa %s462, 1

</llo_original>
